<compile_context>
chip_gen: v7x
topology: tpu7x:2x2x1
jax: 0.10.0
libtpu: 0.0.40
codegen_flags: <defaults>
</compile_context>

<pallas_src>
import jax
import jax.numpy as jnp
from jax.experimental import pallas as pl
from jax.experimental.pallas import tpu as pltpu


def _spd_kernel(x_ref, o_ref):
    """x_ref: (C, 4, TH, TW) phase-split tile; o_ref: (4C, TH, TW) NCHW tile.

    The wrapper arranges phase q = 2*dw + dh, which is exactly the torch.cat
    slab order, so the kernel only interleaves (c, q) -> channel q*C + c with
    four contiguous major-dim stores; the lane dim (TW) is never shuffled.
    """
    C = x_ref.shape[0]
    for p in range(4):                       # static unroll; 4 contiguous stores
        o_ref[p * C:(p + 1) * C, :, :] = x_ref[:, p, :, :]


def _round_up(x, m):
    return ((x + m - 1) // m) * m


def _pick_tiles(n, C, Ho, Wo, itemsize):
    """Padding- and generation-aware (TH, TW) selection.

    One side's VMEM block holds 4*C*TH*TW elements padded to
    (round_up(TH,8), round_up(TW,128)) on the last two dims.  Input + output
    are both double-buffered, so the live set is ~4 blocks; the per-block
    budget is vmem_capacity/8 (live ~ half of VMEM: ~32 MiB on v7x's 64 MiB,
    ~64 MiB on v5e/v6e's 128 MiB parts).
    """
    try:
        vmem_cap = pltpu.get_tpu_info().vmem_capacity_bytes
    except Exception:                        # conservative fallback (v7x-sized)
        vmem_cap = 64 * 1024 * 1024
    budget = max(vmem_cap // 8, 1 << 20)
    vmem_limit = (vmem_cap * 3) // 4

    def block_bytes(th, tw):
        return 4 * C * _round_up(th, 8) * _round_up(tw, 128) * itemsize

    # --- W tiling: prefer the full row; else a multiple of 128 (ragged edge OK).
    if Wo <= 128 or block_bytes(8, Wo) <= budget:
        tw = Wo
    else:
        tw = 128 * max(1, budget // block_bytes(8, 128))   # < Wo by construction

    # --- H tiling: biggest multiple of 8 (or full Ho) that fits the budget.
    if Ho <= 8 or block_bytes(Ho, tw) <= budget:
        th = Ho
    else:
        th = 8 * max(1, budget // block_bytes(8, tw))      # < Ho by construction

    # --- Ensure >= 2 parallel grid steps so both v7x TensorCores are fed.
    if n * pl.cdiv(Ho, th) * pl.cdiv(Wo, tw) < 2 and Ho > 8:
        th = min(th, _round_up((Ho + 1) // 2, 8))

    return th, tw, int(vmem_limit)


@jax.jit
def space_to_depth(x):
    """Pallas space-to-depth. x: (N, C, H, W) -> (N, 4C, H//2, W//2), NCHW."""
    N, C, H, W = x.shape
    assert H % 2 == 0 and W % 2 == 0, "H and W must be even"
    Ho, Wo = H // 2, W // 2

    # Single layout pass: split the 2x2 spatial phases so phase q = 2*dw + dh
    # (== the torch.cat slab index) becomes a major axis while the minor dims
    # stay (Ho, Wo) — sublane/lane dense.  See TODO(synk) above.
    xs = x.reshape(N, C, Ho, 2, Wo, 2)
    xp = jnp.transpose(xs, (0, 1, 5, 3, 2, 4)).reshape(N, C, 4, Ho, Wo)

    TH, TW, vmem_limit = _pick_tiles(N, C, Ho, Wo, x.dtype.itemsize)
    grid = (N, pl.cdiv(Ho, TH), pl.cdiv(Wo, TW))

    return pl.pallas_call(
        _spd_kernel,
        out_shape=jax.ShapeDtypeStruct((N, 4 * C, Ho, Wo), x.dtype),
        grid=grid,
        in_specs=[pl.BlockSpec((None, C, 4, TH, TW),
                               lambda n, h, w: (n, 0, 0, h, w))],
        out_specs=pl.BlockSpec((None, 4 * C, TH, TW),
                               lambda n, h, w: (n, 0, h, w)),
        compiler_params=pltpu.CompilerParams(
            dimension_semantics=("parallel", "parallel", "parallel"),
            vmem_limit_bytes=vmem_limit),
    )(xp)


def _reference(x):
    """Pure-JAX reference mirroring the PyTorch forward exactly."""
    return jnp.concatenate(
        [x[..., ::2, ::2], x[..., 1::2, ::2],
         x[..., ::2, 1::2], x[..., 1::2, 1::2]], axis=1)


if __name__ == "__main__":
    key = jax.random.PRNGKey(0)
    # Small NCHW input consistent with the module's conv-style usage.
    x = jax.random.normal(key, (2, 4, 16, 16), dtype=jnp.float32)

    out = jax.block_until_ready(space_to_depth(x))
    ref = _reference(x)

    assert out.shape == (2, 16, 8, 8), out.shape
    assert out.dtype == x.dtype
    assert jnp.array_equal(out, ref), "Pallas output mismatch vs reference"

    print("KERNEL_OK")
</pallas_src>

<mosaic_0001>
module attributes {stable_mosaic.version = 11 : i64} {
  func.func @_spd_kernel(%arg0: i32, %arg1: i32, %arg2: i32, %arg3: memref<1x4x4x8x8xf32, #tpu.memory_space<vmem>>, %arg4: memref<1x16x8x8xf32, #tpu.memory_space<vmem>>) attributes {dimension_semantics = [#tpu.dimension_semantics<parallel>, #tpu.dimension_semantics<parallel>, #tpu.dimension_semantics<parallel>], iteration_bounds = array<i64: 2, 1, 1>, scalar_prefetch = 0 : i64, scratch_operands = 0 : i64, tpu.core_type = #tpu.core_type<tc>, window_params = [{transform_indices = @transform_0, window_bounds = array<i64: 1, 4, 4, 8, 8>}, {transform_indices = @transform_1, window_bounds = array<i64: 1, 16, 8, 8>}]} {
    %c0 = arith.constant 0 : index
    %c0_0 = arith.constant 0 : index
    %c0_1 = arith.constant 0 : index
    %c0_2 = arith.constant 0 : index
    %c0_3 = arith.constant 0 : index
    %0 = vector.load %arg3[%c0, %c0_0, %c0_1, %c0_2, %c0_3] : memref<1x4x4x8x8xf32, #tpu.memory_space<vmem>>, vector<1x4x1x8x8xf32>
    %1 = vector.shape_cast %0 : vector<1x4x1x8x8xf32> to vector<4x8x8xf32>
    %c0_4 = arith.constant 0 : index
    %c0_5 = arith.constant 0 : index
    %c0_6 = arith.constant 0 : index
    %c0_7 = arith.constant 0 : index
    %2 = vector.load %arg4[%c0_4, %c0_5, %c0_6, %c0_7] : memref<1x16x8x8xf32, #tpu.memory_space<vmem>>, vector<1x4x8x8xf32>
    %3 = vector.shape_cast %2 : vector<1x4x8x8xf32> to vector<4x8x8xf32>
    %4 = vector.shape_cast %1 : vector<4x8x8xf32> to vector<1x4x8x8xf32>
    tpu.vector_store %arg4[%c0_4, %c0_5, %c0_6, %c0_7], %4 {strides = array<i32>} : memref<1x16x8x8xf32, #tpu.memory_space<vmem>>, vector<1x4x8x8xf32>,
    %c0_8 = arith.constant 0 : index
    %c0_9 = arith.constant 0 : index
    %c1 = arith.constant 1 : index
    %c0_10 = arith.constant 0 : index
    %c0_11 = arith.constant 0 : index
    %5 = vector.load %arg3[%c0_8, %c0_9, %c1, %c0_10, %c0_11] : memref<1x4x4x8x8xf32, #tpu.memory_space<vmem>>, vector<1x4x1x8x8xf32>
    %6 = vector.shape_cast %5 : vector<1x4x1x8x8xf32> to vector<4x8x8xf32>
    %c0_12 = arith.constant 0 : index
    %c4 = arith.constant 4 : index
    %c0_13 = arith.constant 0 : index
    %c0_14 = arith.constant 0 : index
    %7 = vector.load %arg4[%c0_12, %c4, %c0_13, %c0_14] : memref<1x16x8x8xf32, #tpu.memory_space<vmem>>, vector<1x4x8x8xf32>
    %8 = vector.shape_cast %7 : vector<1x4x8x8xf32> to vector<4x8x8xf32>
    %9 = vector.shape_cast %6 : vector<4x8x8xf32> to vector<1x4x8x8xf32>
    tpu.vector_store %arg4[%c0_12, %c4, %c0_13, %c0_14], %9 {strides = array<i32>} : memref<1x16x8x8xf32, #tpu.memory_space<vmem>>, vector<1x4x8x8xf32>,
    %c0_15 = arith.constant 0 : index
    %c0_16 = arith.constant 0 : index
    %c2 = arith.constant 2 : index
    %c0_17 = arith.constant 0 : index
    %c0_18 = arith.constant 0 : index
    %10 = vector.load %arg3[%c0_15, %c0_16, %c2, %c0_17, %c0_18] : memref<1x4x4x8x8xf32, #tpu.memory_space<vmem>>, vector<1x4x1x8x8xf32>
    %11 = vector.shape_cast %10 : vector<1x4x1x8x8xf32> to vector<4x8x8xf32>
    %c0_19 = arith.constant 0 : index
    %c8 = arith.constant 8 : index
    %c0_20 = arith.constant 0 : index
    %c0_21 = arith.constant 0 : index
    %12 = vector.load %arg4[%c0_19, %c8, %c0_20, %c0_21] : memref<1x16x8x8xf32, #tpu.memory_space<vmem>>, vector<1x4x8x8xf32>
    %13 = vector.shape_cast %12 : vector<1x4x8x8xf32> to vector<4x8x8xf32>
    %14 = vector.shape_cast %11 : vector<4x8x8xf32> to vector<1x4x8x8xf32>
    tpu.vector_store %arg4[%c0_19, %c8, %c0_20, %c0_21], %14 {strides = array<i32>} : memref<1x16x8x8xf32, #tpu.memory_space<vmem>>, vector<1x4x8x8xf32>,
    %c0_22 = arith.constant 0 : index
    %c0_23 = arith.constant 0 : index
    %c3 = arith.constant 3 : index
    %c0_24 = arith.constant 0 : index
    %c0_25 = arith.constant 0 : index
    %15 = vector.load %arg3[%c0_22, %c0_23, %c3, %c0_24, %c0_25] : memref<1x4x4x8x8xf32, #tpu.memory_space<vmem>>, vector<1x4x1x8x8xf32>
    %16 = vector.shape_cast %15 : vector<1x4x1x8x8xf32> to vector<4x8x8xf32>
    %c0_26 = arith.constant 0 : index
    %c12 = arith.constant 12 : index
    %c0_27 = arith.constant 0 : index
    %c0_28 = arith.constant 0 : index
    %17 = vector.load %arg4[%c0_26, %c12, %c0_27, %c0_28] : memref<1x16x8x8xf32, #tpu.memory_space<vmem>>, vector<1x4x8x8xf32>
    %18 = vector.shape_cast %17 : vector<1x4x8x8xf32> to vector<4x8x8xf32>
    %19 = vector.shape_cast %16 : vector<4x8x8xf32> to vector<1x4x8x8xf32>
    tpu.vector_store %arg4[%c0_26, %c12, %c0_27, %c0_28], %19 {strides = array<i32>} : memref<1x16x8x8xf32, #tpu.memory_space<vmem>>, vector<1x4x8x8xf32>,
    return
  }
  func.func @transform_0(%arg0: i32, %arg1: i32, %arg2: i32) -> (i32, i32, i32, i32, i32) {
    %c0_i32 = arith.constant 0 : i32
    %c0_i32_0 = arith.constant 0 : i32
    %c0_i32_1 = arith.constant 0 : i32
    return %arg0, %c0_i32, %c0_i32_0, %arg1, %arg2 : i32, i32, i32, i32, i32
  }
  func.func @transform_1(%arg0: i32, %arg1: i32, %arg2: i32) -> (i32, i32, i32, i32) {
    %c0_i32 = arith.constant 0 : i32
    %c0_i32_0 = arith.constant 0 : i32
    return %arg0, %c0_i32, %arg1, %arg2 : i32, i32, i32, i32
  }
}

</mosaic_0001>

<llo_original>
// kernel: space_to_depth.1
$region0: #{space_to_depth.1}
  #allocation0 [shape = 'u32[]', space=smem, size = 0x4, offset = 0x4, fixed_abs, tag = 'smem constant byte address 0x4 - core index']
  #allocation1 [shape = 'u32[144,128]{1,0:T(1,128)}', space=vmem, size = 0x12000, scoped, tag = 'internal scratch']
  %s0 = inlined_call_operand.vmem [shape: f32[2,4,4,8,8], index: 0, kind: input, shape index: {}]
  %s1 = inlined_call_operand.vmem [shape: f32[2,16,8,8], index: 1, kind: output, shape index: {}]
  %s2 = sld [smem:[#allocation0]]
  $region37: #{space_to_depth.1} parent=0
    _
  %s4 = ssub.s32 1, %s2
  %s5 = scalar_select 0, %s4, %s2
  loop: start=0, step=1, limit=4
  $region2: #{space_to_depth.1} parent=0 // loop_pre_header
    _
  $region3: #{space_to_depth.1} parent=0 // loop_header
    %s7 = sphi 0, %s11
    %p8 = scmp.ge.s32.totalorder %s7, 4
    %s14 = sphi 0, %s33
    %s15 = sphi 0, %s29
    %s16 = sphi 0, %s25
    %s17 = sphi 0, %s14
    %s18 = sphi 0, %s15
    %s19 = sphi 0, %s16
    %s20 = sphi 0, %s17
    %s21 = sphi 0, %s18
    %s22 = sphi 0, %s19
    %s40 = sphi 0, %s42
    %s43 = sphi 0, %s40
    %s44 = sphi 0, %s43
    %s60 = sphi 0, %s44
    %s70 = sphi 0, %s72
    %s73 = sphi 0, %s70
    %s74 = sphi 0, %s73
    %s90 = sphi 0, %s74
  $region4: #{space_to_depth.1} parent=0 // loop_header_branch
    %10 = sbr.rel (%p8) target = $region8
  $region5: #{space_to_depth.1} parent=0 // loop_body
    %s12 = ssub.s32 %s7, 1
    %s13 = ssub.s32 %s7, 2
    %s23 = sadd.s32 1, %s16
    %p24 = scmp.ge.s32.totalorder %s23, 1
    %s25 = scalar_select %p24, 0, %s23
    %s26 = sadd.s32 1, %s15
    %s27 = scalar_select %p24, %s26, %s15
    %p28 = scmp.ge.s32.totalorder %s27, 1
    %s29 = scalar_select %p28, 0, %s27
    %s30 = sadd.s32 1, %s14
    %s31 = scalar_select %p28, %s30, %s14
    %p32 = scmp.ge.s32.totalorder %s31, 2
    %s33 = scalar_select %p32, 0, %s31
    %s34 = ssub.s32 %s14, %s33
    %s35 = ssub.s32 %s15, %s29
    %s36 = sor.u32 %s34, %s35
    %s37 = ssub.s32 %s16, %s25
    %s38 = sor.u32 %s36, %s37
    %p39 = scmp.eq.s32.totalorder %s38, 0
    %s41 = sadd.s32 %s40, 1
    %s42 = scalar_select %p39, %s40, %s41
    %p45 = pneg %p39
    %p46 = scmp.eq.s32.totalorder %s7, 1
    %p47 = por %p45, %p46
    %p48 = scmp.ne.s32.totalorder %s40, %s43
    %p49 = scmp.eq.s32.totalorder %s7, 0
    %p50 = por %p48, %p49
    %p51 = scmp.ne.s32.totalorder %s40, %s43
    %p52 = scmp.eq.s32.totalorder %s12, 1
    %p53 = por %p51, %p52
    %p54 = scmp.ne.s32.totalorder %s43, %s44
    %p55 = scmp.eq.s32.totalorder %s12, 0
    %p56 = por %p54, %p55
    %p57 = scmp.ne.s32.totalorder %s43, %s44
    %p58 = scmp.eq.s32.totalorder %s13, 1
    %p59 = por %p57, %p58
    %p61 = scmp.ne.s32.totalorder %s44, %s60
    %p62 = scmp.eq.s32.totalorder %s13, 0
    %p63 = por %p61, %p62
    %s64 = ssub.s32 %s14, %s33
    %s65 = ssub.s32 %s15, %s29
    %s66 = sor.u32 %s64, %s65
    %s67 = ssub.s32 %s16, %s25
    %s68 = sor.u32 %s66, %s67
    %p69 = scmp.eq.s32.totalorder %s68, 0
    %s71 = sadd.s32 %s70, 1
    %s72 = scalar_select %p69, %s70, %s71
    %p75 = pneg %p69
    %p76 = scmp.eq.s32.totalorder %s7, 1
    %p77 = por %p75, %p76
    %p78 = scmp.ne.s32.totalorder %s70, %s73
    %p79 = scmp.eq.s32.totalorder %s7, 0
    %p80 = por %p78, %p79
    %p81 = scmp.ne.s32.totalorder %s70, %s73
    %p82 = scmp.eq.s32.totalorder %s12, 1
    %p83 = por %p81, %p82
    %p84 = scmp.ne.s32.totalorder %s73, %s74
    %p85 = scmp.eq.s32.totalorder %s12, 0
    %p86 = por %p84, %p85
    %p87 = scmp.ne.s32.totalorder %s73, %s74
    %p88 = scmp.eq.s32.totalorder %s13, 1
    %p89 = por %p87, %p88
    %p91 = scmp.ne.s32.totalorder %s74, %s90
    %p92 = scmp.eq.s32.totalorder %s13, 0
    %p93 = por %p91, %p92
    %p94 = scmp.le.s32.totalorder 1, %s7
    %p95 = scmp.lt.s32.totalorder %s7, 3
    %p96 = pnand %p94, %p95
    %p97 = pneg %p96
    // Predicated region
    $region9: #{space_to_depth.1} parent=5 // pred_check
      _
    $region10: #{space_to_depth.1} parent=5 // pred_check_branch
      %99 = sbr.rel (%p96) target = $region12
    $region11: #{space_to_depth.1} parent=5 // pred_region
      %s100 = ssub.s32 %s7, 1
    $region12: #{space_to_depth.1} parent=5 // pred_fallthru
      _
    %p101 = scmp.lt.s32.totalorder %s7, 2
    // Predicated region
    $region13: #{space_to_depth.1} parent=5 // pred_check
      %p102 = pneg %p101
    $region14: #{space_to_depth.1} parent=5 // pred_check_branch
      %104 = sbr.rel (%p102) target = $region16
    $region15: #{space_to_depth.1} parent=5 // pred_region
      // Predicated region
      $region17: #{space_to_depth.1} parent=15 // pred_check
        %p105 = pneg %p50
      $region18: #{space_to_depth.1} parent=15 // pred_check_branch
        %107 = sbr.rel (%p105) target = $region20
      $region19: #{space_to_depth.1} parent=15 // pred_region
        %p108 = scmp.lt.s32.totalorder %s14, 1
        %s109 = scalar_select %p108, %s14, 1
        %p110 = scmp.lt.s32.totalorder %s15, 0
        %s111 = scalar_select %p110, %s15, 0
        %p112 = scmp.lt.s32.totalorder %s16, 0
        %s113 = scalar_select %p112, %s16, 0
        %s114 = sadd.s32 %s113, %s111
        %s115 = smul.addr %s109, 16
        %s116 = sadd.s32 %s114, %s115
        %s117 = smul.addr %s116, 8
        %s118 = scalar_lea.vmem %s0, %s117
      $region20: #{space_to_depth.1} parent=15 // pred_fallthru
        _
    $region16: #{space_to_depth.1} parent=5 // pred_fallthru
      _
    %p119 = scmp.le.s32.totalorder 1, %s7
    %p120 = scmp.lt.s32.totalorder %s7, 3
    %p121 = pnand %p119, %p120
    %p122 = pneg %p121
    // Predicated region
    $region21: #{space_to_depth.1} parent=5 // pred_check
      _
    $region22: #{space_to_depth.1} parent=5 // pred_check_branch
      %124 = sbr.rel (%p121) target = $region24
    $region23: #{space_to_depth.1} parent=5 // pred_region
      %s125 = ssub.s32 %s7, 1
      %p126 = scmp.lt.s32.totalorder %s17, 1
      %s127 = scalar_select %p126, %s17, 1
      %p128 = scmp.lt.s32.totalorder %s18, 0
      %s129 = scalar_select %p128, %s18, 0
      %p130 = scmp.lt.s32.totalorder %s19, 0
      %s131 = scalar_select %p130, %s19, 0
      %s132 = sadd.s32 %s131, %s129
      %s133 = smul.addr %s127, 16
      %s134 = sadd.s32 %s132, %s133
      %s135 = smul.addr %s134, 8
      %s136 = scalar_lea.vmem %s0, %s135
      %p137 = pneg %p56
      %p138 = pneg %p53
      %p139 = pneg %p86
      %p140 = pneg %p83
      %p141 = scmp.lt.s32.totalorder %s17, 1
      %s142 = scalar_select %p141, %s17, 1
      %p143 = scmp.lt.s32.totalorder %s18, 0
      %s144 = scalar_select %p143, %s18, 0
      %p145 = scmp.lt.s32.totalorder %s19, 0
      %s146 = scalar_select %p145, %s19, 0
      %s147 = sadd.s32 %s146, %s144
      %s148 = smul.addr %s142, 16
      %s149 = sadd.s32 %s147, %s148
      %s150 = smul.addr %s149, 8
      %s151 = scalar_lea.vmem %s1, %s150
      %p152 = scmp.lt.s32.totalorder %s17, 1
      %s153 = scalar_select %p152, %s17, 1
      %p154 = scmp.lt.s32.totalorder %s18, 0
      %s155 = scalar_select %p154, %s18, 0
      %p156 = scmp.lt.s32.totalorder %s19, 0
      %s157 = scalar_select %p156, %s19, 0
      %s158 = sadd.s32 %s157, %s155
      %s159 = smul.addr %s153, 16
      %s160 = sadd.s32 %s158, %s159
      %s161 = smul.addr %s160, 8
      %s162 = scalar_lea.vmem %s0, %s161
      %p163 = scmp.lt.s32.totalorder %s17, 1
      %s164 = scalar_select %p163, %s17, 1
      %p165 = scmp.lt.s32.totalorder %s18, 0
      %s166 = scalar_select %p165, %s18, 0
      %p167 = scmp.lt.s32.totalorder %s19, 0
      %s168 = scalar_select %p167, %s19, 0
      %s169 = sadd.s32 %s168, %s166
      %s170 = smul.addr %s164, 16
      %s171 = sadd.s32 %s169, %s170
      %s172 = smul.addr %s171, 8
      %s173 = scalar_lea.vmem %s1, %s172
      %v174 = vld [vmem:[%s162] sm:$0xff]
      %v175 = vld [vmem:[%s162 + $0x20] sm:$0xff]
      %v176 = vld [vmem:[%s162 + $0x40] sm:$0xff]
      %v177 = vld [vmem:[%s162 + $0x60] sm:$0xff]
      %vm178 = vcmask 64512
      %179 = vst.msk [vmem:[%s173] sm:$0xff] %vm178, %v174
      %180 = vst.msk [vmem:[%s173 + $0x8] sm:$0xff] %vm178, %v175
      %181 = vst.msk [vmem:[%s173 + $0x10] sm:$0xff] %vm178, %v176
      %182 = vst.msk [vmem:[%s173 + $0x18] sm:$0xff] %vm178, %v177
      %s183 = scalar_lea.vmem %s162, 8
      %v184 = vld [vmem:[%s183] sm:$0xff]
      %v185 = vld [vmem:[%s183 + $0x20] sm:$0xff]
      %v186 = vld [vmem:[%s183 + $0x40] sm:$0xff]
      %v187 = vld [vmem:[%s183 + $0x60] sm:$0xff]
      %s188 = scalar_lea.vmem %s173, 32
      %189 = vst.msk [vmem:[%s188] sm:$0xff] %vm178, %v184
      %190 = vst.msk [vmem:[%s188 + $0x8] sm:$0xff] %vm178, %v185
      %191 = vst.msk [vmem:[%s188 + $0x10] sm:$0xff] %vm178, %v186
      %192 = vst.msk [vmem:[%s188 + $0x18] sm:$0xff] %vm178, %v187
      %s193 = scalar_lea.vmem %s162, 16
      %v194 = vld [vmem:[%s193] sm:$0xff]
      %v195 = vld [vmem:[%s193 + $0x20] sm:$0xff]
      %v196 = vld [vmem:[%s193 + $0x40] sm:$0xff]
      %v197 = vld [vmem:[%s193 + $0x60] sm:$0xff]
      %s198 = scalar_lea.vmem %s173, 64
      %199 = vst.msk [vmem:[%s198] sm:$0xff] %vm178, %v194
      %200 = vst.msk [vmem:[%s198 + $0x8] sm:$0xff] %vm178, %v195
      %201 = vst.msk [vmem:[%s198 + $0x10] sm:$0xff] %vm178, %v196
      %202 = vst.msk [vmem:[%s198 + $0x18] sm:$0xff] %vm178, %v197
      %s203 = scalar_lea.vmem %s162, 24
      %v204 = vld [vmem:[%s203] sm:$0xff]
      %v205 = vld [vmem:[%s203 + $0x20] sm:$0xff]
      %v206 = vld [vmem:[%s203 + $0x40] sm:$0xff]
      %v207 = vld [vmem:[%s203 + $0x60] sm:$0xff]
      %s208 = scalar_lea.vmem %s173, 96
      %209 = vst.msk [vmem:[%s208] sm:$0xff] %vm178, %v204
      %210 = vst.msk [vmem:[%s208 + $0x8] sm:$0xff] %vm178, %v205
      %211 = vst.msk [vmem:[%s208 + $0x10] sm:$0xff] %vm178, %v206
      %212 = vst.msk [vmem:[%s208 + $0x18] sm:$0xff] %vm178, %v207
      %p213 = scmp.lt.s32.totalorder %s17, 1
      %s214 = scalar_select %p213, %s17, 1
      %p215 = scmp.lt.s32.totalorder %s18, 0
      %s216 = scalar_select %p215, %s18, 0
      %p217 = scmp.lt.s32.totalorder %s19, 0
      %s218 = scalar_select %p217, %s19, 0
      %s219 = sadd.s32 %s218, %s216
      %s220 = smul.addr %s214, 16
      %s221 = sadd.s32 %s219, %s220
      %s222 = smul.addr %s221, 8
      %s223 = scalar_lea.vmem %s1, %s222
      // Predicated region
      $region25: #{space_to_depth.1} parent=23 // pred_check
        %p224 = pneg %p83
      $region26: #{space_to_depth.1} parent=23 // pred_check_branch
        %226 = sbr.rel (%p224) target = $region28
      $region27: #{space_to_depth.1} parent=23 // pred_region
        _
      $region28: #{space_to_depth.1} parent=23 // pred_fallthru
        _
    $region24: #{space_to_depth.1} parent=5 // pred_fallthru
      _
    %p227 = scmp.le.s32.totalorder 2, %s7
    // Predicated region
    $region29: #{space_to_depth.1} parent=5 // pred_check
      %p228 = pneg %p227
    $region30: #{space_to_depth.1} parent=5 // pred_check_branch
      %230 = sbr.rel (%p228) target = $region32
    $region31: #{space_to_depth.1} parent=5 // pred_region
      %s231 = ssub.s32 %s7, 2
      // Predicated region
      $region33: #{space_to_depth.1} parent=31 // pred_check
        %p232 = pneg %p89
      $region34: #{space_to_depth.1} parent=31 // pred_check_branch
        %234 = sbr.rel (%p232) target = $region36
      $region35: #{space_to_depth.1} parent=31 // pred_region
        %p235 = scmp.lt.s32.totalorder %s20, 1
        %s236 = scalar_select %p235, %s20, 1
        %p237 = scmp.lt.s32.totalorder %s21, 0
        %s238 = scalar_select %p237, %s21, 0
        %p239 = scmp.lt.s32.totalorder %s22, 0
        %s240 = scalar_select %p239, %s22, 0
        %s241 = sadd.s32 %s240, %s238
        %s242 = smul.addr %s236, 16
        %s243 = sadd.s32 %s241, %s242
        %s244 = smul.addr %s243, 8
        %s245 = scalar_lea.vmem %s1, %s244
      $region36: #{space_to_depth.1} parent=31 // pred_fallthru
        _
    $region32: #{space_to_depth.1} parent=5 // pred_fallthru
      _
  $region6: #{space_to_depth.1} parent=0 // loop_footer
    %s11 = sadd.s32 1, %s7
  $region7: #{space_to_depth.1} parent=0 // loop_footer_branch
    %6 = sbr.rel target = $region3
  $region8: #{space_to_depth.1} parent=0 // loop_exit
    _

</llo_original>
